<compile_context>
chip_gen: v6e
topology: v6e:2x2x1
jax: 0.10.0
libtpu: 0.0.40
codegen_flags: <defaults>
</compile_context>

<pallas_src>
import jax
import jax.numpy as jnp
from jax.experimental import pallas as pl
from jax.experimental.pallas import tpu as pltpu


# ----------------------------------------------------------------------------
# Kernel body
# ----------------------------------------------------------------------------
def _sigmoid_kernel(x_ref, o_ref):
    # Upcast to f32 for the transcendental, write back in the native dtype.
    xf = x_ref[...].astype(jnp.float32)
    y = 0.5 * (jnp.tanh(0.5 * xf) + 1.0)   # == 1 / (1 + exp(-x)), one EUP op
    o_ref[...] = y.astype(o_ref.dtype)


# ----------------------------------------------------------------------------
# Layout / tiling heuristics
# ----------------------------------------------------------------------------
_LANE_CANDIDATES = (4096, 2048, 1024, 512, 256, 128)
_SUBLANE_PACK = {4: 8, 2: 16, 1: 32}   # rows per vreg sublane group by itemsize


def _per_chip_defaults():
    """(block_bytes, vmem_limit_bytes or None) sized per TPU generation."""
    kind = ""
    try:
        kind = jax.devices()[0].device_kind.lower()
    except Exception:
        pass
    if "v6" in kind:          # 128 MiB physical VMEM, ~1.4 TB/s HBM
        block = 16 << 20
    elif "v5" in kind:        # 128 MiB physical VMEM, ~0.8 TB/s HBM
        block = 8 << 20
    elif "7" in kind:         # v7x: 64 MiB physical VMEM/TC, ~3.2 TB/s HBM
        block = 8 << 20
    else:                     # unknown / older chips: stay conservative
        return 2 << 20, None
    # in + out streams, double-buffered, plus headroom for internal scratch.
    vmem_limit = 4 * block + (16 << 20)
    return block, vmem_limit


def _choose_lanes(n, sub):
    """Widest lane count (multiple of 128) that divides n; None if n % 128."""
    # Prefer widths whose row count is a clean multiple of the sublane packing
    # (whole (sub, 128) register tiles per block).
    for w in _LANE_CANDIDATES:
        if n % (w * sub) == 0:
            return w
    for w in _LANE_CANDIDATES:
        if n % w == 0:
            return w
    return None


def _choose_tiling(rows, lanes, itemsize, sub, block_bytes):
    """Pick (tile_rows, n_blocks) for a (rows, lanes) slab."""
    row_bytes = lanes * itemsize
    slab_bytes = rows * row_bytes

    # Rows per block targeting ~block_bytes (multiple of the sublane packing).
    max_tile_rows = max(sub, (block_bytes // row_bytes) // sub * sub)

    # Guarantee >=2 blocks on multi-MiB slabs so the "parallel" grid axis can
    # actually be sharded across both v7x TensorCores.
    min_blocks = 2 if slab_bytes >= (2 << 20) else 1
    n_blocks = max(min_blocks, pl.cdiv(rows, max_tile_rows))
    if n_blocks > 1 and n_blocks % 2:
        n_blocks += 1                       # even split across the 2 TCs
    n_blocks = min(n_blocks, rows)

    tile_rows = pl.cdiv(rows, n_blocks)
    if tile_rows >= rows:
        return rows, 1                      # single block == full row extent

    # Whole (sub, 128) register tiles per block.
    tile_rows = min(pl.cdiv(tile_rows, sub) * sub, rows)
    if tile_rows >= rows:
        return rows, 1

    # Prefer a tile height that divides rows evenly: every store stays a
    # full-width unmasked vst and the per-TC work is balanced.  Otherwise the
    # ragged last block is handled by Pallas' masking.
    if rows % tile_rows:
        lo = max(sub, tile_rows // 2)
        for cand in range(tile_rows, lo - 1, -sub):
            if rows % cand == 0:
                tile_rows = cand
                break

    return tile_rows, pl.cdiv(rows, tile_rows)


# ----------------------------------------------------------------------------
# pallas_call wrapper
# ----------------------------------------------------------------------------
def _sigmoid_slab(slab, *, block_bytes, vmem_limit, sub, donate=False):
    rows, lanes = slab.shape
    itemsize = jnp.dtype(slab.dtype).itemsize
    tile_rows, n_blocks = _choose_tiling(rows, lanes, itemsize, sub, block_bytes)

    cp_kwargs = {"dimension_semantics": ("parallel",)}
    if vmem_limit is not None:
        cp_kwargs["vmem_limit_bytes"] = vmem_limit
    call_kwargs = {"input_output_aliases": {0: 0}} if donate else {}

    return pl.pallas_call(
        _sigmoid_kernel,
        out_shape=jax.ShapeDtypeStruct((rows, lanes), slab.dtype),
        grid_spec=pl.GridSpec(
            grid=(n_blocks,),
            in_specs=[pl.BlockSpec((tile_rows, lanes), lambda i: (i, 0))],
            out_specs=pl.BlockSpec((tile_rows, lanes), lambda i: (i, 0)),
        ),
        compiler_params=pltpu.CompilerParams(**cp_kwargs),
        **call_kwargs,
    )(slab)


def sigmoid(x: jax.Array, *, block_bytes: int | None = None,
            donate: bool = False) -> jax.Array:
    """Elementwise sigmoid (1 / (1 + exp(-x))) on arbitrary-shaped input.

    Integer inputs are promoted to float32 (numpy-style; torch.nn.Sigmoid
    would reject them).  `donate=True` aliases the output onto the input
    buffer (caller must be done with the input), matching torch's sigmoid_.
    """
    orig_shape = x.shape
    dtype = x.dtype
    if not jnp.issubdtype(dtype, jnp.floating):
        x = x.astype(jnp.float32)
        dtype = jnp.float32

    n = x.size
    if n == 0:
        return x

    chip_block, vmem_limit = _per_chip_defaults()
    if block_bytes is None:
        block_bytes = chip_block

    itemsize = jnp.dtype(dtype).itemsize
    sub = _SUBLANE_PACK.get(itemsize, 8)

    lanes = _choose_lanes(n, sub)
    if lanes is not None:
        # Common case: zero-copy reshape to a lane-dense slab.  Exactly one
        # HBM read + one HBM write of n elements; no pad, no slice.
        slab = x.reshape(n // lanes, lanes)
        out = _sigmoid_slab(slab, block_bytes=block_bytes,
                            vmem_limit=vmem_limit, sub=sub, donate=donate)
        return out.reshape(orig_shape)

    # Rare: n is not a multiple of 128.  Run the lane-aligned prefix through
    # the kernel and the (<128-element) remainder through the same math in
    # plain XLA, then stitch.  No whole-array pad/slice round trip.
    flat = x.reshape(-1)
    n_main = (n // 128) * 128
    tail = flat[n_main:].astype(jnp.float32)
    tail = (1.0 / (1.0 + jnp.exp(-tail))).astype(dtype)
    if n_main == 0:
        # Tiny (<128-element) input: not worth a kernel launch.
        return tail.reshape(orig_shape)
    head_lanes = _choose_lanes(n_main, sub)
    head = _sigmoid_slab(flat[:n_main].reshape(n_main // head_lanes, head_lanes),
                         block_bytes=block_bytes, vmem_limit=vmem_limit, sub=sub)
    return jnp.concatenate([head.reshape(-1), tail]).reshape(orig_shape)


# ----------------------------------------------------------------------------
# Self-test
# ----------------------------------------------------------------------------
if __name__ == "__main__":
    key = jax.random.PRNGKey(0)

    # Small NCHW input consistent with a conv feature map.
    x = jax.random.normal(key, (2, 4, 16, 16), dtype=jnp.float32)
    y = sigmoid(x)
    jax.block_until_ready(y)
    ref = 1.0 / (1.0 + jnp.exp(-x))
    assert y.shape == x.shape and y.dtype == x.dtype
    assert jnp.max(jnp.abs(y - ref)) < 1e-5

    # Native-dtype streaming path (bf16 stays bf16 end to end).
    xb = x.astype(jnp.bfloat16)
    yb = sigmoid(xb)
    jax.block_until_ready(yb)
    refb = (1.0 / (1.0 + jnp.exp(-xb.astype(jnp.float32)))).astype(jnp.bfloat16)
    assert yb.shape == xb.shape and yb.dtype == xb.dtype
    assert jnp.max(jnp.abs(yb.astype(jnp.float32) - refb.astype(jnp.float32))) < 1e-2

    # Non-lane-aligned size exercises the prefix-kernel + tiny-tail path
    # (no whole-array pad / slice).
    xo = jax.random.normal(jax.random.PRNGKey(1), (5, 45), dtype=jnp.float32)
    yo = sigmoid(xo)
    jax.block_until_ready(yo)
    refo = 1.0 / (1.0 + jnp.exp(-xo))
    assert yo.shape == xo.shape and yo.dtype == xo.dtype
    assert jnp.max(jnp.abs(yo - refo)) < 1e-5

    print("KERNEL_OK")
</pallas_src>

<mosaic_0001>
module attributes {stable_mosaic.version = 11 : i64} {
  func.func @_sigmoid_kernel(%arg0: i32, %arg1: memref<8x256xf32, #tpu.memory_space<vmem>>, %arg2: memref<8x256xf32, #tpu.memory_space<vmem>>) attributes {dimension_semantics = [#tpu.dimension_semantics<parallel>], iteration_bounds = array<i64: 1>, scalar_prefetch = 0 : i64, scratch_operands = 0 : i64, tpu.core_type = #tpu.core_type<tc>, window_params = [{transform_indices = @transform_0, window_bounds = array<i64: 8, 256>}, {transform_indices = @transform_1, window_bounds = array<i64: 8, 256>}]} {
    %c0 = arith.constant 0 : index
    %c0_0 = arith.constant 0 : index
    %0 = vector.load %arg1[%c0, %c0_0] : memref<8x256xf32, #tpu.memory_space<vmem>>, vector<8x256xf32>
    %cst = arith.constant 5.000000e-01 : f32
    %1 = vector.broadcast %cst : f32 to vector<8x256xf32>
    %2 = arith.mulf %1, %0 : vector<8x256xf32>
    %3 = math.tanh %2 : vector<8x256xf32>
    %cst_1 = arith.constant 1.000000e+00 : f32
    %4 = vector.broadcast %cst_1 : f32 to vector<8x256xf32>
    %5 = arith.addf %3, %4 : vector<8x256xf32>
    %cst_2 = arith.constant 5.000000e-01 : f32
    %6 = vector.broadcast %cst_2 : f32 to vector<8x256xf32>
    %7 = arith.mulf %6, %5 : vector<8x256xf32>
    %c0_3 = arith.constant 0 : index
    %c0_4 = arith.constant 0 : index
    %8 = vector.load %arg2[%c0_3, %c0_4] : memref<8x256xf32, #tpu.memory_space<vmem>>, vector<8x256xf32>
    tpu.vector_store %arg2[%c0_3, %c0_4], %7 {strides = array<i32>} : memref<8x256xf32, #tpu.memory_space<vmem>>, vector<8x256xf32>,
    return
  }
  func.func @transform_0(%arg0: i32) -> (i32, i32) {
    %c0_i32 = arith.constant 0 : i32
    %c0_i32_0 = arith.constant 0 : i32
    return %arg0, %c0_i32 : i32, i32
  }
  func.func @transform_1(%arg0: i32) -> (i32, i32) {
    %c0_i32 = arith.constant 0 : i32
    %c0_i32_0 = arith.constant 0 : i32
    return %arg0, %c0_i32 : i32, i32
  }
}

</mosaic_0001>

<llo_original>
// kernel: tpu_custom_call.1
$region0: #{tpu_custom_call.1}
  #allocation0 [shape = 'u32[]', space=smem, size = 0x4, offset = 0x4, fixed_abs, tag = 'smem constant byte address 0x4 - core index']
  #allocation1 [shape = 'u32[144,128]{1,0:T(1,128)}', space=vmem, size = 0x12000, scoped, tag = 'internal scratch']
  %s0 = inlined_call_operand.hbm [shape: f32[8,256], index: 0, kind: input, shape index: {}]
  %s1 = inlined_call_operand.hbm [shape: f32[8,256], index: 1, kind: output, shape index: {}]
  %s2 = sld [smem:[#allocation0]]
  $region18: #{tpu_custom_call.1} parent=0
    _
  %s4 = ssub.s32 1, %s2
  %s5 = scalar_select 0, %s4, %s2
  $region1: #{tpu_custom_call.1} parent=0
    #allocation2 [shape = 'u8[8192]{0}', space=vmem, size = 0x2000, scoped, tag = 'input window, operand 0, single buffered']
    #allocation3 [shape = 's32[1]{0}', space=sflag, size = 0x4, scoped, tag = 'scoped memory for tpu_custom_call.1']
    #allocation4 [shape = 's32[1]{0}', space=sflag, size = 0x4, scoped, tag = 'scoped memory for tpu_custom_call.1']
    #allocation5 [shape = 'u8[8192]{0}', space=vmem, size = 0x2000, scoped, tag = 'output window, operand 0, single buffered']
    %6 = vsyncpa [#allocation3], 0
    %7 = vsyncpa [#allocation4], 0
    // Predicated region
    $region2: #{tpu_custom_call.1} parent=1 // pred_check
      _
    $region3: #{tpu_custom_call.1} parent=1 // pred_check_branch
      %9 = sbr.rel (0) target = $region5
    $region4: #{tpu_custom_call.1} parent=1 // pred_region
      %s11 = ssub.s32 256, 256
      %12 = vsyncadd [#allocation3], %s11
      %s14 = sshll.u32 [#allocation2], 4
      %s15 = int_to_ptr.vmem [resolvable:$true] %s14
      %17 = dma.hbm_to_vmem [thread:$0]  %s0, 256, %s15, [#allocation3]
    $region5: #{tpu_custom_call.1} parent=1 // pred_fallthru
      _
    // Predicated region
    $region6: #{tpu_custom_call.1} parent=1 // pred_check
      _
    $region7: #{tpu_custom_call.1} parent=1 // pred_check_branch
      %19 = sbr.rel (0) target = $region9
    $region8: #{tpu_custom_call.1} parent=1 // pred_region
      %20 = dma.done [#allocation3], 256
    $region9: #{tpu_custom_call.1} parent=1 // pred_fallthru
      _
    %v21 = vld [vmem:[#allocation2] sm:$0xff]
    %v22 = vld [vmem:[#allocation2 + $0x8] sm:$0xff]
    %v23 = vmul.f32 %v21, 0.5
    %v24 = vmul.f32 %v22, 0.5
    %v25 = vtanh.pop %v23
    %v26 = vtanh.pop %v24
    %v27 = vadd.f32 %v25, 1.0
    %v28 = vadd.f32 %v26, 1.0
    %v29 = vmul.f32 %v27, 0.5
    %v30 = vmul.f32 %v28, 0.5
    %31 = vst [vmem:[#allocation5] sm:$0xff] %v29
    %32 = vst [vmem:[#allocation5 + $0x8] sm:$0xff] %v30
    // Predicated region
    $region10: #{tpu_custom_call.1} parent=1 // pred_check
      _
    $region11: #{tpu_custom_call.1} parent=1 // pred_check_branch
      %34 = sbr.rel (0) target = $region13
    $region12: #{tpu_custom_call.1} parent=1 // pred_region
      %s36 = ssub.s32 256, 256
      %37 = vsyncadd [#allocation4], %s36
      %s39 = sshll.u32 [#allocation5], 4
      %s40 = int_to_ptr.vmem [resolvable:$true] %s39
      %42 = dma.vmem_to_hbm [thread:$0]  %s40, 256, %s1, [#allocation4]
    $region13: #{tpu_custom_call.1} parent=1 // pred_fallthru
      _
    // Predicated region
    $region14: #{tpu_custom_call.1} parent=1 // pred_check
      _
    $region15: #{tpu_custom_call.1} parent=1 // pred_check_branch
      %44 = sbr.rel (0) target = $region17
    $region16: #{tpu_custom_call.1} parent=1 // pred_region
      %45 = dma.done [#allocation4], 256
    $region17: #{tpu_custom_call.1} parent=1 // pred_fallthru
      _
    %46 = vsyncpa [#allocation3], 1
    %47 = vsyncpa [#allocation4], 1

</llo_original>
